<compile_context>
chip_gen: v6e
topology: v6e:2x2x1
jax: 0.10.0
libtpu: 0.0.40
codegen_flags: <defaults>
</compile_context>

<pallas_src>
import jax
import jax.numpy as jnp
from jax.experimental import pallas as pl
from jax.experimental.pallas import tpu as pltpu


def su_cnn_kernel(x_ref, w1_ref, b1_ref, w2_ref, b2_ref, o_ref):
    # Layer 1: Linear + bias + ReLU (MXU matmul, f32 accumulation; elementwise in f32).
    h = jnp.dot(x_ref[...], w1_ref[...], preferred_element_type=jnp.float32)
    h = jnp.maximum(h + b1_ref[...], 0.0)
    # Dropout(0.1) -> identity at inference time.
    # Layer 2: Linear + bias.
    out = jnp.dot(h.astype(w2_ref.dtype), w2_ref[...],
                  preferred_element_type=jnp.float32)
    out = out + b2_ref[...]
    o_ref[...] = out.astype(o_ref.dtype)


def _pad_to(n, m):
    return max(m, pl.cdiv(n, m) * m)


def su_cnn_forward(x, w1, b1, w2, b2, *, bm=128):
    """Fused MLP forward. x:(B,D), w1:(D,H), b1:(1,H), w2:(H,C), b2:(1,C)."""
    B, D = x.shape
    H = w1.shape[1]
    C = w2.shape[1]

    # --- Lane-dense feature dims: pad D, H, C to multiples of 128. -----------
    D_pad = _pad_to(D, 128)
    H_pad = _pad_to(H, 128)
    C_pad = _pad_to(C, 128)

    if D_pad != D:
        x = jnp.pad(x, ((0, 0), (0, D_pad - D)))
        w1 = jnp.pad(w1, ((0, D_pad - D), (0, 0)))
    if H_pad != H:
        w1 = jnp.pad(w1, ((0, 0), (0, H_pad - H)))
        b1 = jnp.pad(b1, ((0, 0), (0, H_pad - H)))
        w2 = jnp.pad(w2, ((0, H_pad - H), (0, 0)))
    if C_pad != C:
        w2 = jnp.pad(w2, ((0, 0), (0, C_pad - C)))
        b2 = jnp.pad(b2, ((0, 0), (0, C_pad - C)))

    # --- Batch tiling: full batch in one step if small, else tiles of `bm`. --
    if B <= bm:
        bm_eff = B                      # block == full dim; no padding needed
        B_pad = B
    else:
        bm_eff = bm
        B_pad = pl.cdiv(B, bm_eff) * bm_eff
        if B_pad != B:
            x = jnp.pad(x, ((0, B_pad - B), (0, 0)))

    grid = (B_pad // bm_eff,)

    out = pl.pallas_call(
        su_cnn_kernel,
        out_shape=jax.ShapeDtypeStruct((B_pad, C_pad), x.dtype),
        grid_spec=pl.GridSpec(
            grid=grid,
            in_specs=[
                pl.BlockSpec((bm_eff, D_pad), lambda i: (i, 0)),  # x tile (streams over batch)
                pl.BlockSpec((D_pad, H_pad), lambda i: (0, 0)),   # W1 (resident)
                pl.BlockSpec((1, H_pad), lambda i: (0, 0)),       # b1 (resident)
                pl.BlockSpec((H_pad, C_pad), lambda i: (0, 0)),   # W2 (resident)
                pl.BlockSpec((1, C_pad), lambda i: (0, 0)),       # b2 (resident)
            ],
            out_specs=pl.BlockSpec((bm_eff, C_pad), lambda i: (i, 0)),
        ),
        compiler_params=pltpu.CompilerParams(
            dimension_semantics=("parallel",)),   # batch steps shard across TCs (v7x)
    )(x, w1, b1, w2, b2)

    # Strip batch / lane padding.
    return out[:B, :C]


def init_linear_params(key, fan_in, fan_out, dtype=jnp.float32):
    # PyTorch nn.Linear default init: U(-1/sqrt(fan_in), 1/sqrt(fan_in))
    kw, kb = jax.random.split(key)
    bound = 1.0 / jnp.sqrt(jnp.asarray(fan_in, dtype))
    w = jax.random.uniform(kw, (fan_in, fan_out), dtype, -bound, bound)
    b = jax.random.uniform(kb, (1, fan_out), dtype, -bound, bound)
    return w, b


if __name__ == "__main__":
    # Shapes consistent with the module:
    #   img_size (opt.img_size)        -> 256
    #   num_hidden_su (1000 in module) -> 512 (scaled down)
    #   out_num (opt.class_groups[i])  -> 16
    # Batch 256 so the batch grid has 2 parallel steps of 128 rows (MXU-shaped,
    # and both TensorCores get work on v7x).
    B, IMG_SIZE, HIDDEN, OUT_NUM = 256, 256, 512, 16

    key = jax.random.PRNGKey(0)
    kx, k1, k2 = jax.random.split(key, 3)

    x = jax.random.normal(kx, (B, IMG_SIZE), jnp.float32)
    w1, b1 = init_linear_params(k1, IMG_SIZE, HIDDEN)
    w2, b2 = init_linear_params(k2, HIDDEN, OUT_NUM)

    out = su_cnn_forward(x, w1, b1, w2, b2)
    out = jax.block_until_ready(out)

    # Pure-JAX reference check (same math, eval-mode dropout).
    ref = jnp.maximum(x @ w1 + b1, 0.0) @ w2 + b2
    assert out.shape == (B, OUT_NUM), out.shape
    assert jnp.allclose(out, ref, atol=1e-4, rtol=1e-4), "mismatch vs reference"

    print("KERNEL_OK")
</pallas_src>

<mosaic_0001>
module attributes {stable_mosaic.version = 11 : i64} {
  func.func @su_cnn_kernel(%arg0: i32, %arg1: memref<128x256xf32, #tpu.memory_space<vmem>>, %arg2: memref<256x512xf32, #tpu.memory_space<vmem>>, %arg3: memref<1x512xf32, #tpu.memory_space<vmem>>, %arg4: memref<512x128xf32, #tpu.memory_space<vmem>>, %arg5: memref<1x128xf32, #tpu.memory_space<vmem>>, %arg6: memref<128x128xf32, #tpu.memory_space<vmem>>) attributes {dimension_semantics = [#tpu.dimension_semantics<parallel>], iteration_bounds = array<i64: 2>, scalar_prefetch = 0 : i64, scratch_operands = 0 : i64, tpu.core_type = #tpu.core_type<tc>, window_params = [{transform_indices = @transform_0, window_bounds = array<i64: 128, 256>}, {pipeline_mode = #tpu.pipeline_mode<synchronous>, transform_indices = @transform_1, window_bounds = array<i64: 256, 512>}, {pipeline_mode = #tpu.pipeline_mode<synchronous>, transform_indices = @transform_2, window_bounds = array<i64: 1, 512>}, {pipeline_mode = #tpu.pipeline_mode<synchronous>, transform_indices = @transform_3, window_bounds = array<i64: 512, 128>}, {pipeline_mode = #tpu.pipeline_mode<synchronous>, transform_indices = @transform_4, window_bounds = array<i64: 1, 128>}, {transform_indices = @transform_5, window_bounds = array<i64: 128, 128>}]} {
    %c0 = arith.constant 0 : index
    %c0_0 = arith.constant 0 : index
    %0 = vector.load %arg1[%c0, %c0_0] : memref<128x256xf32, #tpu.memory_space<vmem>>, vector<128x256xf32>
    %c0_1 = arith.constant 0 : index
    %c0_2 = arith.constant 0 : index
    %1 = vector.load %arg2[%c0_1, %c0_2] : memref<256x512xf32, #tpu.memory_space<vmem>>, vector<256x512xf32>
    %cst = arith.constant dense<0.000000e+00> : vector<128x512xf32>
    %2 = tpu.matmul %0, %1, %cst {dimension_numbers = #tpu.dot_dimension_numbers<[1], [0], [0], [1], [0, 0, 1, 1], [], []>} : vector<128x256xf32>, vector<256x512xf32>, vector<128x512xf32> -> vector<128x512xf32>
    %c0_3 = arith.constant 0 : index
    %c0_4 = arith.constant 0 : index
    %3 = vector.load %arg3[%c0_3, %c0_4] : memref<1x512xf32, #tpu.memory_space<vmem>>, vector<1x512xf32>
    %4 = vector.broadcast %3 : vector<1x512xf32> to vector<128x512xf32>
    %5 = arith.addf %2, %4 : vector<128x512xf32>
    %cst_5 = arith.constant 0.000000e+00 : f32
    %6 = vector.broadcast %cst_5 : f32 to vector<128x512xf32>
    %7 = arith.maximumf %5, %6 : vector<128x512xf32>
    %c0_6 = arith.constant 0 : index
    %c0_7 = arith.constant 0 : index
    %8 = vector.load %arg4[%c0_6, %c0_7] : memref<512x128xf32, #tpu.memory_space<vmem>>, vector<512x128xf32>
    %cst_8 = arith.constant dense<0.000000e+00> : vector<128x128xf32>
    %9 = tpu.matmul %7, %8, %cst_8 {dimension_numbers = #tpu.dot_dimension_numbers<[1], [0], [0], [1], [0, 0, 1, 1], [], []>} : vector<128x512xf32>, vector<512x128xf32>, vector<128x128xf32> -> vector<128x128xf32>
    %c0_9 = arith.constant 0 : index
    %c0_10 = arith.constant 0 : index
    %10 = vector.load %arg5[%c0_9, %c0_10] : memref<1x128xf32, #tpu.memory_space<vmem>>, vector<1x128xf32>
    %11 = vector.broadcast %10 : vector<1x128xf32> to vector<128x128xf32>
    %12 = arith.addf %9, %11 : vector<128x128xf32>
    %c0_11 = arith.constant 0 : index
    %c0_12 = arith.constant 0 : index
    %13 = vector.load %arg6[%c0_11, %c0_12] : memref<128x128xf32, #tpu.memory_space<vmem>>, vector<128x128xf32>
    tpu.vector_store %arg6[%c0_11, %c0_12], %12 {strides = array<i32>} : memref<128x128xf32, #tpu.memory_space<vmem>>, vector<128x128xf32>,
    return
  }
  func.func @transform_0(%arg0: i32) -> (i32, i32) {
    %c0_i32 = arith.constant 0 : i32
    %c0_i32_0 = arith.constant 0 : i32
    return %arg0, %c0_i32 : i32, i32
  }
  func.func @transform_1(%arg0: i32) -> (i32, i32) {
    %c0_i32 = arith.constant 0 : i32
    %c0_i32_0 = arith.constant 0 : i32
    %c0_i32_1 = arith.constant 0 : i32
    return %c0_i32, %c0_i32_0 : i32, i32
  }
  func.func @transform_2(%arg0: i32) -> (i32, i32) {
    %c0_i32 = arith.constant 0 : i32
    %c0_i32_0 = arith.constant 0 : i32
    %c0_i32_1 = arith.constant 0 : i32
    return %c0_i32, %c0_i32_0 : i32, i32
  }
  func.func @transform_3(%arg0: i32) -> (i32, i32) {
    %c0_i32 = arith.constant 0 : i32
    %c0_i32_0 = arith.constant 0 : i32
    %c0_i32_1 = arith.constant 0 : i32
    return %c0_i32, %c0_i32_0 : i32, i32
  }
  func.func @transform_4(%arg0: i32) -> (i32, i32) {
    %c0_i32 = arith.constant 0 : i32
    %c0_i32_0 = arith.constant 0 : i32
    %c0_i32_1 = arith.constant 0 : i32
    return %c0_i32, %c0_i32_0 : i32, i32
  }
  func.func @transform_5(%arg0: i32) -> (i32, i32) {
    %c0_i32 = arith.constant 0 : i32
    %c0_i32_0 = arith.constant 0 : i32
    return %arg0, %c0_i32 : i32, i32
  }
}

</mosaic_0001>

<llo_original>
// kernel: tpu_custom_call.1
$region0: #{tpu_custom_call.1}
  #allocation0 [shape = 'u32[]', space=smem, size = 0x4, offset = 0x4, fixed_abs, tag = 'smem constant byte address 0x4 - core index']
  #allocation1 [shape = 'u32[144,128]{1,0:T(1,128)}', space=vmem, size = 0x12000, scoped, tag = 'internal scratch']
  %s0 = inlined_call_operand.hbm [shape: f32[256,256], index: 0, kind: input, shape index: {}]
  %s1 = inlined_call_operand.hbm [shape: f32[256,512], index: 1, kind: input, shape index: {}]
  %s2 = inlined_call_operand.hbm [shape: f32[1,512], index: 2, kind: input, shape index: {}]
  %s3 = inlined_call_operand.hbm [shape: f32[512,128], index: 3, kind: input, shape index: {}]
  %s4 = inlined_call_operand.vmem [shape: f32[1,128], index: 4, kind: input, shape index: {}]
  %s5 = inlined_call_operand.hbm [shape: f32[256,128], index: 5, kind: output, shape index: {}]
  %s6 = sld [smem:[#allocation0]]
  $region69: #{tpu_custom_call.1} parent=0
    _
  %s8 = ssub.s32 1, %s6
  %s9 = scalar_select 0, %s8, %s6
  $region1: #{tpu_custom_call.1} parent=0
    #allocation2 [shape = 'u8[262144]{0}', space=vmem, size = 0x40000, scoped, tag = 'input window, operand 0']
    #allocation3 [shape = 's32[2]{0}', space=sflag, size = 0x8, scoped, tag = 'scoped memory for tpu_custom_call.1']
    #allocation4 [shape = 's32[2]{0}', space=sflag, size = 0x8, scoped, tag = 'scoped memory for tpu_custom_call.1']
    #allocation5 [shape = 'u8[524288]{0}', space=vmem, size = 0x80000, scoped, tag = 'input window, operand 1, single buffered']
    #allocation6 [shape = 's32[1]{0}', space=sflag, size = 0x4, scoped, tag = 'scoped memory for tpu_custom_call.1']
    #allocation7 [shape = 'u8[2048]{0}', space=vmem, size = 0x800, scoped, tag = 'input window, operand 2, single buffered']
    #allocation8 [shape = 'u8[262144]{0}', space=vmem, size = 0x40000, scoped, tag = 'input window, operand 3, single buffered']
    #allocation9 [shape = 's32[1]{0}', space=sflag, size = 0x4, scoped, tag = 'scoped memory for tpu_custom_call.1']
    #allocation10 [shape = 'u8[131072]{0}', space=vmem, size = 0x20000, scoped, tag = 'output window, operand 0']
    %10 = vsyncpa [#allocation3], 0
    %s11 = scalar_lea.sflag [#allocation3], 1
    %12 = vsyncpa %s11, 0
    %13 = vsyncpa [#allocation6], 0
    %14 = vsyncpa [#allocation9], 0
    %15 = vsyncpa [#allocation4], 0
    %s16 = scalar_lea.sflag [#allocation4], 1
    %17 = vsyncpa %s16, 0
    loop: start=0, step=1, limit=4
    $region2: #{tpu_custom_call.1} parent=1 // loop_pre_header
      _
    $region3: #{tpu_custom_call.1} parent=1 // loop_header
      %s19 = sphi 0, %s23
      %p20 = scmp.ge.s32.totalorder %s19, 4
      %s29 = sphi 0, %s31
      %s32 = sphi 0, %s29
      %s33 = sphi 0, %s32
      %s49 = sphi 0, %s33
      %s53 = sphi 0, %s53
      %s55 = sphi 0, %s53
      %s56 = sphi 0, %s55
      %s70 = sphi 0, %s56
      %s74 = sphi 0, %s74
      %s76 = sphi 0, %s74
      %s77 = sphi 0, %s76
      %s91 = sphi 0, %s77
      %s95 = sphi 0, %s95
      %s97 = sphi 0, %s95
      %s98 = sphi 0, %s97
      %s112 = sphi 0, %s98
      %s116 = sphi 0, %s116
      %s118 = sphi 0, %s116
      %s119 = sphi 0, %s118
      %s133 = sphi 0, %s119
      %s139 = sphi 0, %s141
      %s142 = sphi 0, %s139
      %s143 = sphi 0, %s142
      %s159 = sphi 0, %s143
    $region4: #{tpu_custom_call.1} parent=1 // loop_header_branch
      %22 = sbr.rel (%p20) target = $region8
    $region5: #{tpu_custom_call.1} parent=1 // loop_body
      %s24 = ssub.s32 %s19, 1
      %s25 = ssub.s32 %s19, 2
      %s26 = sadd.s32 %s19, 1
      %s27 = ssub.s32 %s19, %s26
      %p28 = scmp.eq.s32.totalorder %s27, 0
      %s30 = sadd.s32 %s29, 1
      %s31 = scalar_select %p28, %s29, %s30
      %p34 = pneg %p28
      %p35 = scmp.eq.s32.totalorder %s19, 1
      %p36 = por %p34, %p35
      %p37 = scmp.ne.s32.totalorder %s29, %s32
      %p38 = scmp.eq.s32.totalorder %s19, 0
      %p39 = por %p37, %p38
      %p40 = scmp.ne.s32.totalorder %s29, %s32
      %p41 = scmp.eq.s32.totalorder %s24, 1
      %p42 = por %p40, %p41
      %p43 = scmp.ne.s32.totalorder %s32, %s33
      %p44 = scmp.eq.s32.totalorder %s24, 0
      %p45 = por %p43, %p44
      %p46 = scmp.ne.s32.totalorder %s32, %s33
      %p47 = scmp.eq.s32.totalorder %s25, 1
      %p48 = por %p46, %p47
      %p50 = scmp.ne.s32.totalorder %s33, %s49
      %p51 = scmp.eq.s32.totalorder %s25, 0
      %p52 = por %p50, %p51
      %s54 = sadd.s32 %s53, 1
      %p57 = scmp.eq.s32.totalorder %s19, 1
      %p58 = scmp.ne.s32.totalorder %s53, %s55
      %p59 = scmp.eq.s32.totalorder %s19, 0
      %p60 = por %p58, %p59
      %p61 = scmp.ne.s32.totalorder %s53, %s55
      %p62 = scmp.eq.s32.totalorder %s24, 1
      %p63 = por %p61, %p62
      %p64 = scmp.ne.s32.totalorder %s55, %s56
      %p65 = scmp.eq.s32.totalorder %s24, 0
      %p66 = por %p64, %p65
      %p67 = scmp.ne.s32.totalorder %s55, %s56
      %p68 = scmp.eq.s32.totalorder %s25, 1
      %p69 = por %p67, %p68
      %p71 = scmp.ne.s32.totalorder %s56, %s70
      %p72 = scmp.eq.s32.totalorder %s25, 0
      %p73 = por %p71, %p72
      %s75 = sadd.s32 %s74, 1
      %p78 = scmp.eq.s32.totalorder %s19, 1
      %p79 = scmp.ne.s32.totalorder %s74, %s76
      %p80 = scmp.eq.s32.totalorder %s19, 0
      %p81 = por %p79, %p80
      %p82 = scmp.ne.s32.totalorder %s74, %s76
      %p83 = scmp.eq.s32.totalorder %s24, 1
      %p84 = por %p82, %p83
      %p85 = scmp.ne.s32.totalorder %s76, %s77
      %p86 = scmp.eq.s32.totalorder %s24, 0
      %p87 = por %p85, %p86
      %p88 = scmp.ne.s32.totalorder %s76, %s77
      %p89 = scmp.eq.s32.totalorder %s25, 1
      %p90 = por %p88, %p89
      %p92 = scmp.ne.s32.totalorder %s77, %s91
      %p93 = scmp.eq.s32.totalorder %s25, 0
      %p94 = por %p92, %p93
      %s96 = sadd.s32 %s95, 1
      %p99 = scmp.eq.s32.totalorder %s19, 1
      %p100 = scmp.ne.s32.totalorder %s95, %s97
      %p101 = scmp.eq.s32.totalorder %s19, 0
      %p102 = por %p100, %p101
      %p103 = scmp.ne.s32.totalorder %s95, %s97
      %p104 = scmp.eq.s32.totalorder %s24, 1
      %p105 = por %p103, %p104
      %p106 = scmp.ne.s32.totalorder %s97, %s98
      %p107 = scmp.eq.s32.totalorder %s24, 0
      %p108 = por %p106, %p107
      %p109 = scmp.ne.s32.totalorder %s97, %s98
      %p110 = scmp.eq.s32.totalorder %s25, 1
      %p111 = por %p109, %p110
      %p113 = scmp.ne.s32.totalorder %s98, %s112
      %p114 = scmp.eq.s32.totalorder %s25, 0
      %p115 = por %p113, %p114
      %s117 = sadd.s32 %s116, 1
      %p120 = scmp.eq.s32.totalorder %s19, 1
      %p121 = scmp.ne.s32.totalorder %s116, %s118
      %p122 = scmp.eq.s32.totalorder %s19, 0
      %p123 = por %p121, %p122
      %p124 = scmp.ne.s32.totalorder %s116, %s118
      %p125 = scmp.eq.s32.totalorder %s24, 1
      %p126 = por %p124, %p125
      %p127 = scmp.ne.s32.totalorder %s118, %s119
      %p128 = scmp.eq.s32.totalorder %s24, 0
      %p129 = por %p127, %p128
      %p130 = scmp.ne.s32.totalorder %s118, %s119
      %p131 = scmp.eq.s32.totalorder %s25, 1
      %p132 = por %p130, %p131
      %p134 = scmp.ne.s32.totalorder %s119, %s133
      %p135 = scmp.eq.s32.totalorder %s25, 0
      %p136 = por %p134, %p135
      %s137 = ssub.s32 %s19, %s26
      %p138 = scmp.eq.s32.totalorder %s137, 0
      %s140 = sadd.s32 %s139, 1
      %s141 = scalar_select %p138, %s139, %s140
      %p144 = pneg %p138
      %p145 = scmp.eq.s32.totalorder %s19, 1
      %p146 = por %p144, %p145
      %p147 = scmp.ne.s32.totalorder %s139, %s142
      %p148 = scmp.eq.s32.totalorder %s19, 0
      %p149 = por %p147, %p148
      %p150 = scmp.ne.s32.totalorder %s139, %s142
      %p151 = scmp.eq.s32.totalorder %s24, 1
      %p152 = por %p150, %p151
      %p153 = scmp.ne.s32.totalorder %s142, %s143
      %p154 = scmp.eq.s32.totalorder %s24, 0
      %p155 = por %p153, %p154
      %p156 = scmp.ne.s32.totalorder %s142, %s143
      %p157 = scmp.eq.s32.totalorder %s25, 1
      %p158 = por %p156, %p157
      %p160 = scmp.ne.s32.totalorder %s143, %s159
      %p161 = scmp.eq.s32.totalorder %s25, 0
      %p162 = por %p160, %p161
      %p163 = scmp.le.s32.totalorder 1, %s19
      %p164 = scmp.lt.s32.totalorder %s19, 3
      %p165 = pnand %p163, %p164
      %p166 = pneg %p165
      // Predicated region
      $region9: #{tpu_custom_call.1} parent=5 // pred_check
        _
      $region10: #{tpu_custom_call.1} parent=5 // pred_check_branch
        %168 = sbr.rel (%p165) target = $region12
      $region11: #{tpu_custom_call.1} parent=5 // pred_region
        %s169 = ssub.s32 %s19, 1
        // Predicated region
        $region13: #{tpu_custom_call.1} parent=11 // pred_check
          %p170 = pneg %p66
        $region14: #{tpu_custom_call.1} parent=11 // pred_check_branch
          %172 = sbr.rel (%p170) target = $region16
        $region15: #{tpu_custom_call.1} parent=11 // pred_region
          %s174 = ssub.s32 16384, 16384
          %175 = vsyncadd [#allocation6], %s174
          %s176 = sshll.u32 [#allocation5], 4
          %s177 = int_to_ptr.vmem [resolvable:$true] %s176
          %182 = dma.hbm_to_vmem [thread:$0]  %s1, 16384, %s177, [#allocation6], 512, 512, 32
        $region16: #{tpu_custom_call.1} parent=11 // pred_fallthru
          _
        // Predicated region
        $region17: #{tpu_custom_call.1} parent=11 // pred_check
          %p183 = pneg %p87
        $region18: #{tpu_custom_call.1} parent=11 // pred_check_branch
          %185 = sbr.rel (%p183) target = $region20
        $region19: #{tpu_custom_call.1} parent=11 // pred_region
          %s187 = ssub.s32 64, 64
          %188 = vsyncadd [#allocation6], %s187
          %s190 = sshll.u32 [#allocation7], 4
          %s191 = int_to_ptr.vmem [resolvable:$true] %s190
          %193 = dma.hbm_to_vmem [thread:$0]  %s2, 64, %s191, [#allocation6]
        $region20: #{tpu_custom_call.1} parent=11 // pred_fallthru
          _
        // Predicated region
        $region21: #{tpu_custom_call.1} parent=11 // pred_check
          %p194 = pneg %p108
        $region22: #{tpu_custom_call.1} parent=11 // pred_check_branch
          %196 = sbr.rel (%p194) target = $region24
        $region23: #{tpu_custom_call.1} parent=11 // pred_region
          %s198 = ssub.s32 8192, 8192
          %199 = vsyncadd [#allocation9], %s198
          %s200 = sshll.u32 [#allocation8], 4
          %s201 = int_to_ptr.vmem [resolvable:$true] %s200
          %206 = dma.hbm_to_vmem [thread:$0]  %s3, 8192, %s201, [#allocation9], 128, 128, 8
        $region24: #{tpu_custom_call.1} parent=11 // pred_fallthru
          _
        // Predicated region
        $region25: #{tpu_custom_call.1} parent=11 // pred_check
          %p207 = pneg %p129
        $region26: #{tpu_custom_call.1} parent=11 // pred_check_branch
          %209 = sbr.rel (%p207) target = $region28
        $region27: #{tpu_custom_call.1} parent=11 // pred_region
          _
        $region28: #{tpu_custom_call.1} parent=11 // pred_fallthru
          _
      $region12: #{tpu_custom_call.1} parent=5 // pred_fallthru
        _
      %p210 = scmp.lt.s32.totalorder %s19, 2
      // Predicated region
      $region29: #{tpu_custom_call.1} parent=5 // pred_check
        %p211 = pneg %p210
      $region30: #{tpu_custom_call.1} parent=5 // pred_check_branch
        %213 = sbr.rel (%p211) target = $region32
      $region31: #{tpu_custom_call.1} parent=5 // pred_region
        // Predicated region
        $region33: #{tpu_custom_call.1} parent=31 // pred_check
          %p214 = pneg %p39
        $region34: #{tpu_custom_call.1} parent=31 // pred_check_branch
          %216 = sbr.rel (%p214) target = $region36
        $region35: #{tpu_custom_call.1} parent=31 // pred_region
          %s217 = sand.u32 %s29, 1
          %s218 = scalar_lea.sflag [#allocation3], %s217
          %s219 = sand.u32 %s29, 1
          %s220 = smul.addr %s219, 256
          %s221 = scalar_lea.vmem [#allocation2], %s220
          %s222 = smul.u32 16, %s19
          %s224 = ssub.s32 4096, 4096
          %225 = vsyncadd %s218, %s224
          %s226 = smul.addr %s222, 2
          %s227 = smul.addr %s226, 128
          %s228 = scalar_lea.hbm %s0, %s227
          %s229 = sshll.u32 %s221, 4
          %s230 = int_to_ptr.vmem [resolvable:$true] %s229
          %235 = dma.hbm_to_vmem [thread:$0]  %s228, 4096, %s230, %s218, 256, 256, 16
        $region36: #{tpu_custom_call.1} parent=31 // pred_fallthru
          _
      $region32: #{tpu_custom_call.1} parent=5 // pred_fallthru
        _
      %p236 = scmp.le.s32.totalorder 1, %s19
      %p237 = scmp.lt.s32.totalorder %s19, 3
      %p238 = pnand %p236, %p237
      %p239 = pneg %p238
      // Predicated region
      $region37: #{tpu_custom_call.1} parent=5 // pred_check
        _
      $region38: #{tpu_custom_call.1} parent=5 // pred_check_branch
        %241 = sbr.rel (%p238) target = $region40
      $region39: #{tpu_custom_call.1} parent=5 // pred_region
        %s242 = ssub.s32 %s19, 1
        %s243 = sand.u32 %s32, 1
        %s244 = scalar_lea.sflag [#allocation3], %s243
        %s245 = sand.u32 %s32, 1
        %s246 = smul.addr %s245, 256
        %s247 = scalar_lea.vmem [#allocation2], %s246
        // Predicated region
        $region41: #{tpu_custom_call.1} parent=39 // pred_check
          %p248 = pneg %p45
        $region42: #{tpu_custom_call.1} parent=39 // pred_check_branch
          %250 = sbr.rel (%p248) target = $region44
        $region43: #{tpu_custom_call.1} parent=39 // pred_region
          %251 = dma.done %s244, 4096
        $region44: #{tpu_custom_call.1} parent=39 // pred_fallthru
          _
        // Predicated region
        $region45: #{tpu_custom_call.1} parent=39 // pred_check
          %p252 = pneg %p66
        $region46: #{tpu_custom_call.1} parent=39 // pred_check_branch
          %254 = sbr.rel (%p252) target = $region48
        $region47: #{tpu_custom_call.1} parent=39 // pred_region
          %255 = dma.done [#allocation6], 16384
        $region48: #{tpu_custom_call.1} parent=39 // pred_fallthru
          _
        // Predicated region
        $region49: #{tpu_custom_call.1} parent=39 // pred_check
          %p256 = pneg %p87
        $region50: #{tpu_custom_call.1} parent=39 // pred_check_branch
          %258 = sbr.rel (%p256) target = $region52
        $region51: #{tpu_custom_call.1} parent=39 // pred_region
          %259 = dma.done [#allocation6], 64
        $region52: #{tpu_custom_call.1} parent=39 // pred_fallthru
          _
        // Predicated region
        $region53: #{tpu_custom_call.1} parent=39 // pred_check
          %p260 = pneg %p108
        $region54: #{tpu_custom_call.1} parent=39 // pred_check_branch
          %262 = sbr.rel (%p260) target = $region56
        $region55: #{tpu_custom_call.1} parent=39 // pred_region
          %263 = dma.done [#allocation9], 8192
        $region56: #{tpu_custom_call.1} parent=39 // pred_fallthru
          _
        %s264 = sand.u32 %s32, 1
        %s265 = scalar_lea.sflag [#allocation3], %s264
        %s266 = sand.u32 %s32, 1
        %s267 = smul.addr %s266, 256
        %s268 = scalar_lea.vmem [#allocation2], %s267
        %p269 = pneg %p45
        %p270 = pneg %p42
        %p271 = pneg %p66
        %p272 = pneg %p63
        %p273 = pneg %p87
        %p274 = pneg %p84
        %p275 = pneg %p108
        %p276 = pneg %p105
        %p277 = pneg %p129
        %p278 = pneg %p126
        %p279 = pneg %p155
        %p280 = pneg %p152
        %s281 = sand.u32 %s142, 1
        %s282 = scalar_lea.sflag [#allocation4], %s281
        %s283 = sand.u32 %s142, 1
        %s284 = smul.addr %s283, 128
        %s285 = scalar_lea.vmem [#allocation10], %s284
        %s286 = smul.u32 16, %s24
        %s287 = smul.u32 16, %s24
        %v288 = vld [vmem:[%s247] sm:$0xff]
        %v289 = vld [vmem:[%s247 + $0x8] sm:$0xff]
        %v290 = vld [vmem:[%s247 + $0x10] sm:$0xff]
        %v291 = vld [vmem:[%s247 + $0x18] sm:$0xff]
        %v292 = vld [vmem:[%s247 + $0x20] sm:$0xff]
        %v293 = vld [vmem:[%s247 + $0x28] sm:$0xff]
        %v294 = vld [vmem:[%s247 + $0x30] sm:$0xff]
        %v295 = vld [vmem:[%s247 + $0x38] sm:$0xff]
        %v296 = vld [vmem:[%s247 + $0x40] sm:$0xff]
        %v297 = vld [vmem:[%s247 + $0x48] sm:$0xff]
        %v298 = vld [vmem:[%s247 + $0x50] sm:$0xff]
        %v299 = vld [vmem:[%s247 + $0x58] sm:$0xff]
        %v300 = vld [vmem:[%s247 + $0x60] sm:$0xff]
        %v301 = vld [vmem:[%s247 + $0x68] sm:$0xff]
        %v302 = vld [vmem:[%s247 + $0x70] sm:$0xff]
        %v303 = vld [vmem:[%s247 + $0x78] sm:$0xff]
        %v304 = vld [vmem:[%s247 + $0x80] sm:$0xff]
        %v305 = vld [vmem:[%s247 + $0x88] sm:$0xff]
        %v306 = vld [vmem:[%s247 + $0x90] sm:$0xff]
        %v307 = vld [vmem:[%s247 + $0x98] sm:$0xff]
        %v308 = vld [vmem:[%s247 + $0xa0] sm:$0xff]
        %v309 = vld [vmem:[%s247 + $0xa8] sm:$0xff]
        %v310 = vld [vmem:[%s247 + $0xb0] sm:$0xff]
        %v311 = vld [vmem:[%s247 + $0xb8] sm:$0xff]
        %v312 = vld [vmem:[%s247 + $0xc0] sm:$0xff]
        %v313 = vld [vmem:[%s247 + $0xc8] sm:$0xff]
        %v314 = vld [vmem:[%s247 + $0xd0] sm:$0xff]
        %v315 = vld [vmem:[%s247 + $0xd8] sm:$0xff]
        %v316 = vld [vmem:[%s247 + $0xe0] sm:$0xff]
        %v317 = vld [vmem:[%s247 + $0xe8] sm:$0xff]
        %v318 = vld [vmem:[%s247 + $0xf0] sm:$0xff]
        %v319 = vld [vmem:[%s247 + $0xf8] sm:$0xff]
        %v320 = vld [vmem:[#allocation5] sm:$0xff]
        %v321 = vld [vmem:[#allocation5 + $0x8] sm:$0xff]
        %v322 = vld [vmem:[#allocation5 + $0x10] sm:$0xff]
        %v323 = vld [vmem:[#allocation5 + $0x18] sm:$0xff]
        %v324 = vld [vmem:[#allocation5 + $0x20] sm:$0xff]
        %v325 = vld [vmem:[#allocation5 + $0x28] sm:$0xff]
        %v326 = vld [vmem:[#allocation5 + $0x30] sm:$0xff]
        %v327 = vld [vmem:[#allocation5 + $0x38] sm:$0xff]
        %v328 = vld [vmem:[#allocation5 + $0x40] sm:$0xff]
        %v329 = vld [vmem:[#allocation5 + $0x48] sm:$0xff]
        %v330 = vld [vmem:[#allocation5 + $0x50] sm:$0xff]
        %v331 = vld [vmem:[#allocation5 + $0x58] sm:$0xff]
        %v332 = vld [vmem:[#allocation5 + $0x60] sm:$0xff]
        %v333 = vld [vmem:[#allocation5 + $0x68] sm:$0xff]
        %v334 = vld [vmem:[#allocation5 + $0x70] sm:$0xff]
        %v335 = vld [vmem:[#allocation5 + $0x78] sm:$0xff]
        %v336 = vld [vmem:[#allocation5 + $0x80] sm:$0xff]
        %v337 = vld [vmem:[#allocation5 + $0x88] sm:$0xff]
        %v338 = vld [vmem:[#allocation5 + $0x90] sm:$0xff]
        %v339 = vld [vmem:[#allocation5 + $0x98] sm:$0xff]
        %v340 = vld [vmem:[#allocation5 + $0xa0] sm:$0xff]
        %v341 = vld [vmem:[#allocation5 + $0xa8] sm:$0xff]
        %v342 = vld [vmem:[#allocation5 + $0xb0] sm:$0xff]
        %v343 = vld [vmem:[#allocation5 + $0xb8] sm:$0xff]
        %v344 = vld [vmem:[#allocation5 + $0xc0] sm:$0xff]
        %v345 = vld [vmem:[#allocation5 + $0xc8] sm:$0xff]
        %v346 = vld [vmem:[#allocation5 + $0xd0] sm:$0xff]
        %v347 = vld [vmem:[#allocation5 + $0xd8] sm:$0xff]
        %v348 = vld [vmem:[#allocation5 + $0xe0] sm:$0xff]
        %v349 = vld [vmem:[#allocation5 + $0xe8] sm:$0xff]
        %v350 = vld [vmem:[#allocation5 + $0xf0] sm:$0xff]
        %v351 = vld [vmem:[#allocation5 + $0xf8] sm:$0xff]
        %v352 = vld [vmem:[#allocation5 + $0x100] sm:$0xff]
        %v353 = vld [vmem:[#allocation5 + $0x108] sm:$0xff]
        %v354 = vld [vmem:[#allocation5 + $0x110] sm:$0xff]
        %v355 = vld [vmem:[#allocation5 + $0x118] sm:$0xff]
        %v356 = vld [vmem:[#allocation5 + $0x120] sm:$0xff]
        %v357 = vld [vmem:[#allocation5 + $0x128] sm:$0xff]
        %v358 = vld [vmem:[#allocation5 + $0x130] sm:$0xff]
        %v359 = vld [vmem:[#allocation5 + $0x138] sm:$0xff]
        %v360 = vld [vmem:[#allocation5 + $0x140] sm:$0xff]
        %v361 = vld [vmem:[#allocation5 + $0x148] sm:$0xff]
        %v362 = vld [vmem:[#allocation5 + $0x150] sm:$0xff]
        %v363 = vld [vmem:[#allocation5 + $0x158] sm:$0xff]
        %v364 = vld [vmem:[#allocation5 + $0x160] sm:$0xff]
        %v365 = vld [vmem:[#allocation5 + $0x168] sm:$0xff]
        %v366 = vld [vmem:[#allocation5 + $0x170] sm:$0xff]
        %v367 = vld [vmem:[#allocation5 + $0x178] sm:$0xff]
        %v368 = vld [vmem:[#allocation5 + $0x180] sm:$0xff]
        %v369 = vld [vmem:[#allocation5 + $0x188] sm:$0xff]
        %v370 = vld [vmem:[#allocation5 + $0x190] sm:$0xff]
        %v371 = vld [vmem:[#allocation5 + $0x198] sm:$0xff]
        %v372 = vld [vmem:[#allocation5 + $0x1a0] sm:$0xff]
        %v373 = vld [vmem:[#allocation5 + $0x1a8] sm:$0xff]
        %v374 = vld [vmem:[#allocation5 + $0x1b0] sm:$0xff]
        %v375 = vld [vmem:[#allocation5 + $0x1b8] sm:$0xff]
        %v376 = vld [vmem:[#allocation5 + $0x1c0] sm:$0xff]
        %v377 = vld [vmem:[#allocation5 + $0x1c8] sm:$0xff]
        %v378 = vld [vmem:[#allocation5 + $0x1d0] sm:$0xff]
        %v379 = vld [vmem:[#allocation5 + $0x1d8] sm:$0xff]
        %v380 = vld [vmem:[#allocation5 + $0x1e0] sm:$0xff]
        %v381 = vld [vmem:[#allocation5 + $0x1e8] sm:$0xff]
        %v382 = vld [vmem:[#allocation5 + $0x1f0] sm:$0xff]
        %v383 = vld [vmem:[#allocation5 + $0x1f8] sm:$0xff]
        %v384 = vld [vmem:[#allocation5 + $0x200] sm:$0xff]
        %v385 = vld [vmem:[#allocation5 + $0x208] sm:$0xff]
        %v386 = vld [vmem:[#allocation5 + $0x210] sm:$0xff]
        %v387 = vld [vmem:[#allocation5 + $0x218] sm:$0xff]
        %v388 = vld [vmem:[#allocation5 + $0x220] sm:$0xff]
        %v389 = vld [vmem:[#allocation5 + $0x228] sm:$0xff]
        %v390 = vld [vmem:[#allocation5 + $0x230] sm:$0xff]
        %v391 = vld [vmem:[#allocation5 + $0x238] sm:$0xff]
        %v392 = vld [vmem:[#allocation5 + $0x240] sm:$0xff]
        %v393 = vld [vmem:[#allocation5 + $0x248] sm:$0xff]
        %v394 = vld [vmem:[#allocation5 + $0x250] sm:$0xff]
        %v395 = vld [vmem:[#allocation5 + $0x258] sm:$0xff]
        %v396 = vld [vmem:[#allocation5 + $0x260] sm:$0xff]
        %v397 = vld [vmem:[#allocation5 + $0x268] sm:$0xff]
        %v398 = vld [vmem:[#allocation5 + $0x270] sm:$0xff]
        %v399 = vld [vmem:[#allocation5 + $0x278] sm:$0xff]
        %v400 = vld [vmem:[#allocation5 + $0x280] sm:$0xff]
        %v401 = vld [vmem:[#allocation5 + $0x288] sm:$0xff]
        %v402 = vld [vmem:[#allocation5 + $0x290] sm:$0xff]
        %v403 = vld [vmem:[#allocation5 + $0x298] sm:$0xff]
        %v404 = vld [vmem:[#allocation5 + $0x2a0] sm:$0xff]
        %v405 = vld [vmem:[#allocation5 + $0x2a8] sm:$0xff]
        %v406 = vld [vmem:[#allocation5 + $0x2b0] sm:$0xff]
        %v407 = vld [vmem:[#allocation5 + $0x2b8] sm:$0xff]
        %v408 = vld [vmem:[#allocation5 + $0x2c0] sm:$0xff]
        %v409 = vld [vmem:[#allocation5 + $0x2c8] sm:$0xff]
        %v410 = vld [vmem:[#allocation5 + $0x2d0] sm:$0xff]
        %v411 = vld [vmem:[#allocation5 + $0x2d8] sm:$0xff]
        %v412 = vld [vmem:[#allocation5 + $0x2e0] sm:$0xff]
        %v413 = vld [vmem:[#allocation5 + $0x2e8] sm:$0xff]
        %v414 = vld [vmem:[#allocation5 + $0x2f0] sm:$0xff]
        %v415 = vld [vmem:[#allocation5 + $0x2f8] sm:$0xff]
        %v416 = vld [vmem:[#allocation5 + $0x300] sm:$0xff]
        %v417 = vld [vmem:[#allocation5 + $0x308] sm:$0xff]
        %v418 = vld [vmem:[#allocation5 + $0x310] sm:$0xff]
        %v419 = vld [vmem:[#allocation5 + $0x318] sm:$0xff]
        %v420 = vld [vmem:[#allocation5 + $0x320] sm:$0xff]
        %v421 = vld [vmem:[#allocation5 + $0x328] sm:$0xff]
        %v422 = vld [vmem:[#allocation5 + $0x330] sm:$0xff]
        %v423 = vld [vmem:[#allocation5 + $0x338] sm:$0xff]
        %v424 = vld [vmem:[#allocation5 + $0x340] sm:$0xff]
        %v425 = vld [vmem:[#allocation5 + $0x348] sm:$0xff]
        %v426 = vld [vmem:[#allocation5 + $0x350] sm:$0xff]
        %v427 = vld [vmem:[#allocation5 + $0x358] sm:$0xff]
        %v428 = vld [vmem:[#allocation5 + $0x360] sm:$0xff]
        %v429 = vld [vmem:[#allocation5 + $0x368] sm:$0xff]
        %v430 = vld [vmem:[#allocation5 + $0x370] sm:$0xff]
        %v431 = vld [vmem:[#allocation5 + $0x378] sm:$0xff]
        %v432 = vld [vmem:[#allocation5 + $0x380] sm:$0xff]
        %v433 = vld [vmem:[#allocation5 + $0x388] sm:$0xff]
        %v434 = vld [vmem:[#allocation5 + $0x390] sm:$0xff]
        %v435 = vld [vmem:[#allocation5 + $0x398] sm:$0xff]
        %v436 = vld [vmem:[#allocation5 + $0x3a0] sm:$0xff]
        %v437 = vld [vmem:[#allocation5 + $0x3a8] sm:$0xff]
        %v438 = vld [vmem:[#allocation5 + $0x3b0] sm:$0xff]
        %v439 = vld [vmem:[#allocation5 + $0x3b8] sm:$0xff]
        %v440 = vld [vmem:[#allocation5 + $0x3c0] sm:$0xff]
        %v441 = vld [vmem:[#allocation5 + $0x3c8] sm:$0xff]
        %v442 = vld [vmem:[#allocation5 + $0x3d0] sm:$0xff]
        %v443 = vld [vmem:[#allocation5 + $0x3d8] sm:$0xff]
        %v444 = vld [vmem:[#allocation5 + $0x3e0] sm:$0xff]
        %v445 = vld [vmem:[#allocation5 + $0x3e8] sm:$0xff]
        %v446 = vld [vmem:[#allocation5 + $0x3f0] sm:$0xff]
        %v447 = vld [vmem:[#allocation5 + $0x3f8] sm:$0xff]
        %v448 = vld [vmem:[#allocation7] sm:$0xf]
        %v450 = vlaneseq
        %v451 = vshrl.u32 %v450, 7
        %v452 = vsub.s32 0, %v451
        %v453 = vrot.slane %v448, %v452
        %v454 = vlaneseq
        %v455 = vshrl.u32 %v454, 7
        %v456 = vsub.s32 1, %v455
        %v457 = vrot.slane %v448, %v456
        %v458 = vlaneseq
        %v459 = vshrl.u32 %v458, 7
        %v460 = vsub.s32 2, %v459
        %v461 = vrot.slane %v448, %v460
        %v462 = vlaneseq
        %v463 = vshrl.u32 %v462, 7
        %v464 = vsub.s32 3, %v463
        %v465 = vrot.slane %v448, %v464
        %470 = vmatprep.subr.mxu0 %v381
        %471 = vmatpush1.msra.mxu0 %v380
        %472 = vmatprep.subr.mxu0 %v377
        %473 = vmatpush1.msra.mxu0 %v376
        %474 = vmatprep.subr.mxu0 %v373
        %475 = vmatpush1.msra.mxu0 %v372
        %476 = vmatprep.subr.mxu0 %v369
        %477 = vmatpush1.msra.mxu0 %v368
        %478 = vmatprep.subr.mxu0 %v365
        %479 = vmatpush1.msra.mxu0 %v364
        %480 = vmatprep.subr.mxu0 %v361
        %481 = vmatpush1.msra.mxu0 %v360
        %482 = vmatprep.subr.mxu0 %v357
        %483 = vmatpush1.msra.mxu0 %v356
        %484 = vmatprep.subr.mxu0 %v353
        %485 = vmatpush1.msra.mxu0 %v352
        %486 = vmatprep.subr.mxu0 %v349
        %487 = vmatpush1.msra.mxu0 %v348
        %488 = vmatprep.subr.mxu0 %v345
        %489 = vmatpush1.msra.mxu0 %v344
        %490 = vmatprep.subr.mxu0 %v341
        %491 = vmatpush1.msra.mxu0 %v340
        %492 = vmatprep.subr.mxu0 %v337
        %493 = vmatpush1.msra.mxu0 %v336
        %494 = vmatprep.subr.mxu0 %v333
        %495 = vmatpush1.msra.mxu0 %v332
        %496 = vmatprep.subr.mxu0 %v329
        %497 = vmatpush1.msra.mxu0 %v328
        %498 = vmatprep.subr.mxu0 %v325
        %499 = vmatpush1.msra.mxu0 %v324
        %500 = vmatprep.subr.mxu0 %v321
        %501 = vmatpush1.msra.mxu0 %v320
        %502 = vmatprep.subr.mxu0 %v445
        %503 = vmatpush2.msra.mxu0 %v444
        %504 = vmatprep.subr.mxu0 %v441
        %505 = vmatpush2.msra.mxu0 %v440
        %506 = vmatprep.subr.mxu0 %v437
        %507 = vmatpush2.msra.mxu0 %v436
        %508 = vmatprep.subr.mxu0 %v433
        %509 = vmatpush2.msra.mxu0 %v432
        %510 = vmatprep.subr.mxu0 %v429
        %511 = vmatpush2.msra.mxu0 %v428
        %512 = vmatprep.subr.mxu0 %v425
        %513 = vmatpush2.msra.mxu0 %v424
        %514 = vmatprep.subr.mxu0 %v421
        %515 = vmatpush2.msra.mxu0 %v420
        %516 = vmatprep.subr.mxu0 %v417
        %517 = vmatpush2.msra.mxu0 %v416
        %518 = vmatprep.subr.mxu0 %v413
        %519 = vmatpush2.msra.mxu0 %v412
        %520 = vmatprep.subr.mxu0 %v409
        %521 = vmatpush2.msra.mxu0 %v408
        %522 = vmatprep.subr.mxu0 %v405
        %523 = vmatpush2.msra.mxu0 %v404
        %524 = vmatprep.subr.mxu0 %v401
        %525 = vmatpush2.msra.mxu0 %v400
        %526 = vmatprep.subr.mxu0 %v397
        %527 = vmatpush2.msra.mxu0 %v396
        %528 = vmatprep.subr.mxu0 %v393
        %529 = vmatpush2.msra.mxu0 %v392
        %530 = vmatprep.subr.mxu0 %v389
        %531 = vmatpush2.msra.mxu0 %v388
        %532 = vmatprep.subr.mxu0 %v385
        %533 = vmatpush2.msra.mxu0 %v384
        %534 = vmatprep.mubr.f32.mxu0 %v289
        %535 = vmatmul.mubr.f32.gmra.mxu0 %v288
        %v536 = vpop.f32.mrf.mxu0
        %v537 = vadd.f32 %v453, %v536
        %v538 = vpop.f32.mrf.mxu0
        %v539 = vadd.f32 %v457, %v538
        %540 = vmatprep.mubr.f32.mxu0 %v291
        %541 = vmatmul.mubr.f32.gmra.mxu0 %v290
        %v542 = vpop.f32.mrf.mxu0
        %v543 = vadd.f32 %v453, %v542
        %v544 = vpop.f32.mrf.mxu0
        %v545 = vadd.f32 %v457, %v544
        %546 = vmatprep.mubr.f32.mxu0 %v293
        %547 = vmatmul.mubr.f32.gmra.mxu0 %v292
        %v548 = vpop.f32.mrf.mxu0
        %v549 = vadd.f32 %v453, %v548
        %v550 = vpop.f32.mrf.mxu0
        %v551 = vadd.f32 %v457, %v550
        %552 = vmatprep.mubr.f32.mxu0 %v295
        %553 = vmatmul.mubr.f32.gmra.mxu0 %v294
        %v554 = vpop.f32.mrf.mxu0
        %v555 = vadd.f32 %v453, %v554
        %v556 = vpop.f32.mrf.mxu0
        %v557 = vadd.f32 %v457, %v556
        %558 = vmatprep.mubr.f32.mxu0 %v297
        %559 = vmatmul.mubr.f32.gmra.mxu0 %v296
        %v560 = vpop.f32.mrf.mxu0
        %v561 = vadd.f32 %v453, %v560
        %v562 = vpop.f32.mrf.mxu0
        %v563 = vadd.f32 %v457, %v562
        %564 = vmatprep.mubr.f32.mxu0 %v299
        %565 = vmatmul.mubr.f32.gmra.mxu0 %v298
        %v566 = vpop.f32.mrf.mxu0
        %v567 = vadd.f32 %v453, %v566
        %v568 = vpop.f32.mrf.mxu0
        %v569 = vadd.f32 %v457, %v568
        %570 = vmatprep.mubr.f32.mxu0 %v301
        %571 = vmatmul.mubr.f32.gmra.mxu0 %v300
        %v572 = vpop.f32.mrf.mxu0
        %v573 = vadd.f32 %v453, %v572
        %v574 = vpop.f32.mrf.mxu0
        %v575 = vadd.f32 %v457, %v574
        %576 = vmatprep.mubr.f32.mxu0 %v303
        %577 = vmatmul.mubr.f32.gmra.mxu0 %v302
        %v578 = vpop.f32.mrf.mxu0
        %v579 = vadd.f32 %v453, %v578
        %v580 = vpop.f32.mrf.mxu0
        %v581 = vadd.f32 %v457, %v580
        %582 = vmatprep.mubr.f32.mxu0 %v305
        %583 = vmatmul.mubr.f32.gmra.mxu0 %v304
        %v584 = vpop.f32.mrf.mxu0
        %v585 = vadd.f32 %v453, %v584
        %v586 = vpop.f32.mrf.mxu0
        %v587 = vadd.f32 %v457, %v586
        %588 = vmatprep.mubr.f32.mxu0 %v307
        %589 = vmatmul.mubr.f32.gmra.mxu0 %v306
        %v590 = vpop.f32.mrf.mxu0
        %v591 = vadd.f32 %v453, %v590
        %v592 = vpop.f32.mrf.mxu0
        %v593 = vadd.f32 %v457, %v592
        %594 = vmatprep.mubr.f32.mxu0 %v309
        %595 = vmatmul.mubr.f32.gmra.mxu0 %v308
        %v596 = vpop.f32.mrf.mxu0
        %v597 = vadd.f32 %v453, %v596
        %v598 = vpop.f32.mrf.mxu0
        %v599 = vadd.f32 %v457, %v598
        %600 = vmatprep.mubr.f32.mxu0 %v311
        %601 = vmatmul.mubr.f32.gmra.mxu0 %v310
        %v602 = vpop.f32.mrf.mxu0
        %v603 = vadd.f32 %v453, %v602
        %v604 = vpop.f32.mrf.mxu0
        %v605 = vadd.f32 %v457, %v604
        %606 = vmatprep.mubr.f32.mxu0 %v313
        %607 = vmatmul.mubr.f32.gmra.mxu0 %v312
        %v608 = vpop.f32.mrf.mxu0
        %v609 = vadd.f32 %v453, %v608
        %v610 = vpop.f32.mrf.mxu0
        %v611 = vadd.f32 %v457, %v610
        %612 = vmatprep.mubr.f32.mxu0 %v315
        %613 = vmatmul.mubr.f32.gmra.mxu0 %v314
        %v614 = vpop.f32.mrf.mxu0
        %v615 = vadd.f32 %v453, %v614
        %v616 = vpop.f32.mrf.mxu0
        %v617 = vadd.f32 %v457, %v616
        %618 = vmatprep.mubr.f32.mxu0 %v317
        %619 = vmatmul.mubr.f32.gmra.mxu0 %v316
        %v620 = vpop.f32.mrf.mxu0
        %v621 = vadd.f32 %v453, %v620
        %v622 = vpop.f32.mrf.mxu0
        %v623 = vadd.f32 %v457, %v622
        %624 = vmatprep.mubr.f32.mxu0 %v319
        %625 = vmatmul.mubr.f32.gmra.mxu0 %v318
        %v626 = vpop.f32.mrf.mxu0
        %v627 = vadd.f32 %v453, %v626
        %v628 = vpop.f32.mrf.mxu0
        %v629 = vadd.f32 %v457, %v628
        %630 = vdwg.mxu0
        %631 = vmatprep.subr.mxu0 %v383
        %632 = vmatpush1.msra.mxu0 %v382
        %633 = vmatprep.subr.mxu0 %v379
        %634 = vmatpush1.msra.mxu0 %v378
        %635 = vmatprep.subr.mxu0 %v375
        %636 = vmatpush1.msra.mxu0 %v374
        %637 = vmatprep.subr.mxu0 %v371
        %638 = vmatpush1.msra.mxu0 %v370
        %639 = vmatprep.subr.mxu0 %v367
        %640 = vmatpush1.msra.mxu0 %v366
        %641 = vmatprep.subr.mxu0 %v363
        %642 = vmatpush1.msra.mxu0 %v362
        %643 = vmatprep.subr.mxu0 %v359
        %644 = vmatpush1.msra.mxu0 %v358
        %645 = vmatprep.subr.mxu0 %v355
        %646 = vmatpush1.msra.mxu0 %v354
        %647 = vmatprep.subr.mxu0 %v351
        %648 = vmatpush1.msra.mxu0 %v350
        %649 = vmatprep.subr.mxu0 %v347
        %650 = vmatpush1.msra.mxu0 %v346
        %651 = vmatprep.subr.mxu0 %v343
        %652 = vmatpush1.msra.mxu0 %v342
        %653 = vmatprep.subr.mxu0 %v339
        %654 = vmatpush1.msra.mxu0 %v338
        %655 = vmatprep.subr.mxu0 %v335
        %656 = vmatpush1.msra.mxu0 %v334
        %657 = vmatprep.subr.mxu0 %v331
        %658 = vmatpush1.msra.mxu0 %v330
        %659 = vmatprep.subr.mxu0 %v327
        %660 = vmatpush1.msra.mxu0 %v326
        %661 = vmatprep.subr.mxu0 %v323
        %662 = vmatpush1.msra.mxu0 %v322
        %663 = vmatprep.subr.mxu0 %v447
        %664 = vmatpush2.msra.mxu0 %v446
        %665 = vmatprep.subr.mxu0 %v443
        %666 = vmatpush2.msra.mxu0 %v442
        %667 = vmatprep.subr.mxu0 %v439
        %668 = vmatpush2.msra.mxu0 %v438
        %669 = vmatprep.subr.mxu0 %v435
        %670 = vmatpush2.msra.mxu0 %v434
        %671 = vmatprep.subr.mxu0 %v431
        %672 = vmatpush2.msra.mxu0 %v430
        %673 = vmatprep.subr.mxu0 %v427
        %674 = vmatpush2.msra.mxu0 %v426
        %675 = vmatprep.subr.mxu0 %v423
        %676 = vmatpush2.msra.mxu0 %v422
        %677 = vmatprep.subr.mxu0 %v419
        %678 = vmatpush2.msra.mxu0 %v418
        %679 = vmatprep.subr.mxu0 %v415
        %680 = vmatpush2.msra.mxu0 %v414
        %681 = vmatprep.subr.mxu0 %v411
        %682 = vmatpush2.msra.mxu0 %v410
        %683 = vmatprep.subr.mxu0 %v407
        %684 = vmatpush2.msra.mxu0 %v406
        %685 = vmatprep.subr.mxu0 %v403
        %686 = vmatpush2.msra.mxu0 %v402
        %687 = vmatprep.subr.mxu0 %v399
        %688 = vmatpush2.msra.mxu0 %v398
        %689 = vmatprep.subr.mxu0 %v395
        %690 = vmatpush2.msra.mxu0 %v394
        %691 = vmatprep.subr.mxu0 %v391
        %692 = vmatpush2.msra.mxu0 %v390
        %693 = vmatprep.subr.mxu0 %v387
        %694 = vmatpush2.msra.mxu0 %v386
        %695 = vmatprep.mubr.f32.mxu0 %v289
        %696 = vmatmul.mubr.f32.gmra.mxu0 %v288
        %v697 = vpop.f32.mrf.mxu0
        %v698 = vadd.f32 %v461, %v697
        %v699 = vpop.f32.mrf.mxu0
        %v700 = vadd.f32 %v465, %v699
        %701 = vmatprep.mubr.f32.mxu0 %v291
        %702 = vmatmul.mubr.f32.gmra.mxu0 %v290
        %v703 = vpop.f32.mrf.mxu0
        %v704 = vadd.f32 %v461, %v703
        %v705 = vpop.f32.mrf.mxu0
        %v706 = vadd.f32 %v465, %v705
        %707 = vmatprep.mubr.f32.mxu0 %v293
        %708 = vmatmul.mubr.f32.gmra.mxu0 %v292
        %v709 = vpop.f32.mrf.mxu0
        %v710 = vadd.f32 %v461, %v709
        %v711 = vpop.f32.mrf.mxu0
        %v712 = vadd.f32 %v465, %v711
        %713 = vmatprep.mubr.f32.mxu0 %v295
        %714 = vmatmul.mubr.f32.gmra.mxu0 %v294
        %v715 = vpop.f32.mrf.mxu0
        %v716 = vadd.f32 %v461, %v715
        %v717 = vpop.f32.mrf.mxu0
        %v718 = vadd.f32 %v465, %v717
        %719 = vmatprep.mubr.f32.mxu0 %v297
        %720 = vmatmul.mubr.f32.gmra.mxu0 %v296
        %v721 = vpop.f32.mrf.mxu0
        %v722 = vadd.f32 %v461, %v721
        %v723 = vpop.f32.mrf.mxu0
        %v724 = vadd.f32 %v465, %v723
        %725 = vmatprep.mubr.f32.mxu0 %v299
        %726 = vmatmul.mubr.f32.gmra.mxu0 %v298
        %v727 = vpop.f32.mrf.mxu0
        %v728 = vadd.f32 %v461, %v727
        %v729 = vpop.f32.mrf.mxu0
        %v730 = vadd.f32 %v465, %v729
        %731 = vmatprep.mubr.f32.mxu0 %v301
        %732 = vmatmul.mubr.f32.gmra.mxu0 %v300
        %v733 = vpop.f32.mrf.mxu0
        %v734 = vadd.f32 %v461, %v733
        %v735 = vpop.f32.mrf.mxu0
        %v736 = vadd.f32 %v465, %v735
        %737 = vmatprep.mubr.f32.mxu0 %v303
        %738 = vmatmul.mubr.f32.gmra.mxu0 %v302
        %v739 = vpop.f32.mrf.mxu0
        %v740 = vadd.f32 %v461, %v739
        %v741 = vpop.f32.mrf.mxu0
        %v742 = vadd.f32 %v465, %v741
        %743 = vmatprep.mubr.f32.mxu0 %v305
        %744 = vmatmul.mubr.f32.gmra.mxu0 %v304
        %v745 = vpop.f32.mrf.mxu0
        %v746 = vadd.f32 %v461, %v745
        %v747 = vpop.f32.mrf.mxu0
        %v748 = vadd.f32 %v465, %v747
        %749 = vmatprep.mubr.f32.mxu0 %v307
        %750 = vmatmul.mubr.f32.gmra.mxu0 %v306
        %v751 = vpop.f32.mrf.mxu0
        %v752 = vadd.f32 %v461, %v751
        %v753 = vpop.f32.mrf.mxu0
        %v754 = vadd.f32 %v465, %v753
        %755 = vmatprep.mubr.f32.mxu0 %v309
        %756 = vmatmul.mubr.f32.gmra.mxu0 %v308
        %v757 = vpop.f32.mrf.mxu0
        %v758 = vadd.f32 %v461, %v757
        %v759 = vpop.f32.mrf.mxu0
        %v760 = vadd.f32 %v465, %v759
        %761 = vmatprep.mubr.f32.mxu0 %v311
        %762 = vmatmul.mubr.f32.gmra.mxu0 %v310
        %v763 = vpop.f32.mrf.mxu0
        %v764 = vadd.f32 %v461, %v763
        %v765 = vpop.f32.mrf.mxu0
        %v766 = vadd.f32 %v465, %v765
        %767 = vmatprep.mubr.f32.mxu0 %v313
        %768 = vmatmul.mubr.f32.gmra.mxu0 %v312
        %v769 = vpop.f32.mrf.mxu0
        %v770 = vadd.f32 %v461, %v769
        %v771 = vpop.f32.mrf.mxu0
        %v772 = vadd.f32 %v465, %v771
        %773 = vmatprep.mubr.f32.mxu0 %v315
        %774 = vmatmul.mubr.f32.gmra.mxu0 %v314
        %v775 = vpop.f32.mrf.mxu0
        %v776 = vadd.f32 %v461, %v775
        %v777 = vpop.f32.mrf.mxu0
        %v778 = vadd.f32 %v465, %v777
        %779 = vmatprep.mubr.f32.mxu0 %v317
        %780 = vmatmul.mubr.f32.gmra.mxu0 %v316
        %v781 = vpop.f32.mrf.mxu0
        %v782 = vadd.f32 %v461, %v781
        %v783 = vpop.f32.mrf.mxu0
        %v784 = vadd.f32 %v465, %v783
        %785 = vmatprep.mubr.f32.mxu0 %v319
        %786 = vmatmul.mubr.f32.gmra.mxu0 %v318
        %v787 = vpop.f32.mrf.mxu0
        %v788 = vadd.f32 %v461, %v787
        %v789 = vpop.f32.mrf.mxu0
        %v790 = vadd.f32 %v465, %v789
        %791 = vdwg.mxu0
        %v792 = vmax.f32 %v537, 0.0
        %v793 = vmax.f32 %v539, 0.0
        %v794 = vmax.f32 %v698, 0.0
        %v795 = vmax.f32 %v700, 0.0
        %v796 = vmax.f32 %v543, 0.0
        %v797 = vmax.f32 %v545, 0.0
        %v798 = vmax.f32 %v704, 0.0
        %v799 = vmax.f32 %v706, 0.0
        %v800 = vmax.f32 %v549, 0.0
        %v801 = vmax.f32 %v551, 0.0
        %v802 = vmax.f32 %v710, 0.0
        %v803 = vmax.f32 %v712, 0.0
        %v804 = vmax.f32 %v555, 0.0
        %v805 = vmax.f32 %v557, 0.0
        %v806 = vmax.f32 %v716, 0.0
        %v807 = vmax.f32 %v718, 0.0
        %v808 = vmax.f32 %v561, 0.0
        %v809 = vmax.f32 %v563, 0.0
        %v810 = vmax.f32 %v722, 0.0
        %v811 = vmax.f32 %v724, 0.0
        %v812 = vmax.f32 %v567, 0.0
        %v813 = vmax.f32 %v569, 0.0
        %v814 = vmax.f32 %v728, 0.0
        %v815 = vmax.f32 %v730, 0.0
        %v816 = vmax.f32 %v573, 0.0
        %v817 = vmax.f32 %v575, 0.0
        %v818 = vmax.f32 %v734, 0.0
        %v819 = vmax.f32 %v736, 0.0
        %v820 = vmax.f32 %v579, 0.0
        %v821 = vmax.f32 %v581, 0.0
        %v822 = vmax.f32 %v740, 0.0
        %v823 = vmax.f32 %v742, 0.0
        %v824 = vmax.f32 %v585, 0.0
        %v825 = vmax.f32 %v587, 0.0
        %v826 = vmax.f32 %v746, 0.0
        %v827 = vmax.f32 %v748, 0.0
        %v828 = vmax.f32 %v591, 0.0
        %v829 = vmax.f32 %v593, 0.0
        %v830 = vmax.f32 %v752, 0.0
        %v831 = vmax.f32 %v754, 0.0
        %v832 = vmax.f32 %v597, 0.0
        %v833 = vmax.f32 %v599, 0.0
        %v834 = vmax.f32 %v758, 0.0
        %v835 = vmax.f32 %v760, 0.0
        %v836 = vmax.f32 %v603, 0.0
        %v837 = vmax.f32 %v605, 0.0
        %v838 = vmax.f32 %v764, 0.0
        %v839 = vmax.f32 %v766, 0.0
        %v840 = vmax.f32 %v609, 0.0
        %v841 = vmax.f32 %v611, 0.0
        %v842 = vmax.f32 %v770, 0.0
        %v843 = vmax.f32 %v772, 0.0
        %v844 = vmax.f32 %v615, 0.0
        %v845 = vmax.f32 %v617, 0.0
        %v846 = vmax.f32 %v776, 0.0
        %v847 = vmax.f32 %v778, 0.0
        %v848 = vmax.f32 %v621, 0.0
        %v849 = vmax.f32 %v623, 0.0
        %v850 = vmax.f32 %v782, 0.0
        %v851 = vmax.f32 %v784, 0.0
        %v852 = vmax.f32 %v627, 0.0
        %v853 = vmax.f32 %v629, 0.0
        %v854 = vmax.f32 %v788, 0.0
        %v855 = vmax.f32 %v790, 0.0
        %v856 = vld [vmem:[#allocation8] sm:$0xff]
        %v857 = vld [vmem:[#allocation8 + $0x8] sm:$0xff]
        %v858 = vld [vmem:[#allocation8 + $0x10] sm:$0xff]
        %v859 = vld [vmem:[#allocation8 + $0x18] sm:$0xff]
        %v860 = vld [vmem:[#allocation8 + $0x20] sm:$0xff]
        %v861 = vld [vmem:[#allocation8 + $0x28] sm:$0xff]
        %v862 = vld [vmem:[#allocation8 + $0x30] sm:$0xff]
        %v863 = vld [vmem:[#allocation8 + $0x38] sm:$0xff]
        %v864 = vld [vmem:[#allocation8 + $0x40] sm:$0xff]
        %v865 = vld [vmem:[#allocation8 + $0x48] sm:$0xff]
        %v866 = vld [vmem:[#allocation8 + $0x50] sm:$0xff]
        %v867 = vld [vmem:[#allocation8 + $0x58] sm:$0xff]
        %v868 = vld [vmem:[#allocation8 + $0x60] sm:$0xff]
        %v869 = vld [vmem:[#allocation8 + $0x68] sm:$0xff]
        %v870 = vld [vmem:[#allocation8 + $0x70] sm:$0xff]
        %v871 = vld [vmem:[#allocation8 + $0x78] sm:$0xff]
        %v872 = vld [vmem:[#allocation8 + $0x80] sm:$0xff]
        %v873 = vld [vmem:[#allocation8 + $0x88] sm:$0xff]
        %v874 = vld [vmem:[#allocation8 + $0x90] sm:$0xff]
        %v875 = vld [vmem:[#allocation8 + $0x98] sm:$0xff]
        %v876 = vld [vmem:[#allocation8 + $0xa0] sm:$0xff]
        %v877 = vld [vmem:[#allocation8 + $0xa8] sm:$0xff]
        %v878 = vld [vmem:[#allocation8 + $0xb0] sm:$0xff]
        %v879 = vld [vmem:[#allocation8 + $0xb8] sm:$0xff]
        %v880 = vld [vmem:[#allocation8 + $0xc0] sm:$0xff]
        %v881 = vld [vmem:[#allocation8 + $0xc8] sm:$0xff]
        %v882 = vld [vmem:[#allocation8 + $0xd0] sm:$0xff]
        %v883 = vld [vmem:[#allocation8 + $0xd8] sm:$0xff]
        %v884 = vld [vmem:[#allocation8 + $0xe0] sm:$0xff]
        %v885 = vld [vmem:[#allocation8 + $0xe8] sm:$0xff]
        %v886 = vld [vmem:[#allocation8 + $0xf0] sm:$0xff]
        %v887 = vld [vmem:[#allocation8 + $0xf8] sm:$0xff]
        %v888 = vld [vmem:[#allocation8 + $0x100] sm:$0xff]
        %v889 = vld [vmem:[#allocation8 + $0x108] sm:$0xff]
        %v890 = vld [vmem:[#allocation8 + $0x110] sm:$0xff]
        %v891 = vld [vmem:[#allocation8 + $0x118] sm:$0xff]
        %v892 = vld [vmem:[#allocation8 + $0x120] sm:$0xff]
        %v893 = vld [vmem:[#allocation8 + $0x128] sm:$0xff]
        %v894 = vld [vmem:[#allocation8 + $0x130] sm:$0xff]
        %v895 = vld [vmem:[#allocation8 + $0x138] sm:$0xff]
        %v896 = vld [vmem:[#allocation8 + $0x140] sm:$0xff]
        %v897 = vld [vmem:[#allocation8 + $0x148] sm:$0xff]
        %v898 = vld [vmem:[#allocation8 + $0x150] sm:$0xff]
        %v899 = vld [vmem:[#allocation8 + $0x158] sm:$0xff]
        %v900 = vld [vmem:[#allocation8 + $0x160] sm:$0xff]
        %v901 = vld [vmem:[#allocation8 + $0x168] sm:$0xff]
        %v902 = vld [vmem:[#allocation8 + $0x170] sm:$0xff]
        %v903 = vld [vmem:[#allocation8 + $0x178] sm:$0xff]
        %v904 = vld [vmem:[#allocation8 + $0x180] sm:$0xff]
        %v905 = vld [vmem:[#allocation8 + $0x188] sm:$0xff]
        %v906 = vld [vmem:[#allocation8 + $0x190] sm:$0xff]
        %v907 = vld [vmem:[#allocation8 + $0x198] sm:$0xff]
        %v908 = vld [vmem:[#allocation8 + $0x1a0] sm:$0xff]
        %v909 = vld [vmem:[#allocation8 + $0x1a8] sm:$0xff]
        %v910 = vld [vmem:[#allocation8 + $0x1b0] sm:$0xff]
        %v911 = vld [vmem:[#allocation8 + $0x1b8] sm:$0xff]
        %v912 = vld [vmem:[#allocation8 + $0x1c0] sm:$0xff]
        %v913 = vld [vmem:[#allocation8 + $0x1c8] sm:$0xff]
        %v914 = vld [vmem:[#allocation8 + $0x1d0] sm:$0xff]
        %v915 = vld [vmem:[#allocation8 + $0x1d8] sm:$0xff]
        %v916 = vld [vmem:[#allocation8 + $0x1e0] sm:$0xff]
        %v917 = vld [vmem:[#allocation8 + $0x1e8] sm:$0xff]
        %v918 = vld [vmem:[#allocation8 + $0x1f0] sm:$0xff]
        %v919 = vld [vmem:[#allocation8 + $0x1f8] sm:$0xff]
        %v920 = vld [vmem:[%s4] sm:$0x1]
        %v922 = vlaneseq
        %v923 = vshrl.u32 %v922, 7
        %v924 = vsub.s32 0, %v923
        %v925 = vrot.slane %v920, %v924
        %927 = vmatprep.subr.mxu0 0.0
        %928 = vmatpush1.msra.mxu0 %v871
        %929 = vmatprep.subr.mxu0 0.0
        %930 = vmatpush1.msra.mxu0 %v870
        %931 = vmatprep.subr.mxu0 0.0
        %932 = vmatpush1.msra.mxu0 %v869
        %933 = vmatprep.subr.mxu0 0.0
        %934 = vmatpush1.msra.mxu0 %v868
        %935 = vmatprep.subr.mxu0 0.0
        %936 = vmatpush1.msra.mxu0 %v867
        %937 = vmatprep.subr.mxu0 0.0
        %938 = vmatpush1.msra.mxu0 %v866
        %939 = vmatprep.subr.mxu0 0.0
        %940 = vmatpush1.msra.mxu0 %v865
        %941 = vmatprep.subr.mxu0 0.0
        %942 = vmatpush1.msra.mxu0 %v864
        %943 = vmatprep.subr.mxu0 0.0
        %944 = vmatpush1.msra.mxu0 %v863
        %945 = vmatprep.subr.mxu0 0.0
        %946 = vmatpush1.msra.mxu0 %v862
        %947 = vmatprep.subr.mxu0 0.0
        %948 = vmatpush1.msra.mxu0 %v861
        %949 = vmatprep.subr.mxu0 0.0
        %950 = vmatpush1.msra.mxu0 %v860
        %951 = vmatprep.subr.mxu0 0.0
        %952 = vmatpush1.msra.mxu0 %v859
        %953 = vmatprep.subr.mxu0 0.0
        %954 = vmatpush1.msra.mxu0 %v858
        %955 = vmatprep.subr.mxu0 0.0
        %956 = vmatpush1.msra.mxu0 %v857
        %957 = vmatprep.subr.mxu0 0.0
        %958 = vmatpush1.msra.mxu0 %v856
        %959 = vmatprep.subr.mxu0 0.0
        %960 = vmatpush2.msra.mxu0 %v887
        %961 = vmatprep.subr.mxu0 0.0
        %962 = vmatpush2.msra.mxu0 %v886
        %963 = vmatprep.subr.mxu0 0.0
        %964 = vmatpush2.msra.mxu0 %v885
        %965 = vmatprep.subr.mxu0 0.0
        %966 = vmatpush2.msra.mxu0 %v884
        %967 = vmatprep.subr.mxu0 0.0
        %968 = vmatpush2.msra.mxu0 %v883
        %969 = vmatprep.subr.mxu0 0.0
        %970 = vmatpush2.msra.mxu0 %v882
        %971 = vmatprep.subr.mxu0 0.0
        %972 = vmatpush2.msra.mxu0 %v881
        %973 = vmatprep.subr.mxu0 0.0
        %974 = vmatpush2.msra.mxu0 %v880
        %975 = vmatprep.subr.mxu0 0.0
        %976 = vmatpush2.msra.mxu0 %v879
        %977 = vmatprep.subr.mxu0 0.0
        %978 = vmatpush2.msra.mxu0 %v878
        %979 = vmatprep.subr.mxu0 0.0
        %980 = vmatpush2.msra.mxu0 %v877
        %981 = vmatprep.subr.mxu0 0.0
        %982 = vmatpush2.msra.mxu0 %v876
        %983 = vmatprep.subr.mxu0 0.0
        %984 = vmatpush2.msra.mxu0 %v875
        %985 = vmatprep.subr.mxu0 0.0
        %986 = vmatpush2.msra.mxu0 %v874
        %987 = vmatprep.subr.mxu0 0.0
        %988 = vmatpush2.msra.mxu0 %v873
        %989 = vmatprep.subr.mxu0 0.0
        %990 = vmatpush2.msra.mxu0 %v872
        %991 = vmatprep.mubr.f32.mxu0 %v793
        %992 = vmatmul.mubr.f32.gmra.mxu0 %v792
        %v993 = vpop.f32.mrf.mxu0
        %v994 = vadd.f32 %v925, %v993
        %v995 = vpop.f32.mrf.mxu0
        %996 = vmatprep.mubr.f32.mxu0 %v797
        %997 = vmatmul.mubr.f32.gmra.mxu0 %v796
        %v998 = vpop.f32.mrf.mxu0
        %v999 = vadd.f32 %v925, %v998
        %v1000 = vpop.f32.mrf.mxu0
        %1001 = vmatprep.mubr.f32.mxu0 %v801
        %1002 = vmatmul.mubr.f32.gmra.mxu0 %v800
        %v1003 = vpop.f32.mrf.mxu0
        %v1004 = vadd.f32 %v925, %v1003
        %v1005 = vpop.f32.mrf.mxu0
        %1006 = vmatprep.mubr.f32.mxu0 %v805
        %1007 = vmatmul.mubr.f32.gmra.mxu0 %v804
        %v1008 = vpop.f32.mrf.mxu0
        %v1009 = vadd.f32 %v925, %v1008
        %v1010 = vpop.f32.mrf.mxu0
        %1011 = vmatprep.mubr.f32.mxu0 %v809
        %1012 = vmatmul.mubr.f32.gmra.mxu0 %v808
        %v1013 = vpop.f32.mrf.mxu0
        %v1014 = vadd.f32 %v925, %v1013
        %v1015 = vpop.f32.mrf.mxu0
        %1016 = vmatprep.mubr.f32.mxu0 %v813
        %1017 = vmatmul.mubr.f32.gmra.mxu0 %v812
        %v1018 = vpop.f32.mrf.mxu0
        %v1019 = vadd.f32 %v925, %v1018
        %v1020 = vpop.f32.mrf.mxu0
        %1021 = vmatprep.mubr.f32.mxu0 %v817
        %1022 = vmatmul.mubr.f32.gmra.mxu0 %v816
        %v1023 = vpop.f32.mrf.mxu0
        %v1024 = vadd.f32 %v925, %v1023
        %v1025 = vpop.f32.mrf.mxu0
        %1026 = vmatprep.mubr.f32.mxu0 %v821
        %1027 = vmatmul.mubr.f32.gmra.mxu0 %v820
        %v1028 = vpop.f32.mrf.mxu0
        %v1029 = vadd.f32 %v925, %v1028
        %v1030 = vpop.f32.mrf.mxu0
        %1031 = vmatprep.mubr.f32.mxu0 %v825
        %1032 = vmatmul.mubr.f32.gmra.mxu0 %v824
        %v1033 = vpop.f32.mrf.mxu0
        %v1034 = vadd.f32 %v925, %v1033
        %v1035 = vpop.f32.mrf.mxu0
        %1036 = vmatprep.mubr.f32.mxu0 %v829
        %1037 = vmatmul.mubr.f32.gmra.mxu0 %v828
        %v1038 = vpop.f32.mrf.mxu0
        %v1039 = vadd.f32 %v925, %v1038
        %v1040 = vpop.f32.mrf.mxu0
        %1041 = vmatprep.mubr.f32.mxu0 %v833
        %1042 = vmatmul.mubr.f32.gmra.mxu0 %v832
        %v1043 = vpop.f32.mrf.mxu0
        %v1044 = vadd.f32 %v925, %v1043
        %v1045 = vpop.f32.mrf.mxu0
        %1046 = vmatprep.mubr.f32.mxu0 %v837
        %1047 = vmatmul.mubr.f32.gmra.mxu0 %v836
        %v1048 = vpop.f32.mrf.mxu0
        %v1049 = vadd.f32 %v925, %v1048
        %v1050 = vpop.f32.mrf.mxu0
        %1051 = vmatprep.mubr.f32.mxu0 %v841
        %1052 = vmatmul.mubr.f32.gmra.mxu0 %v840
        %v1053 = vpop.f32.mrf.mxu0
        %v1054 = vadd.f32 %v925, %v1053
        %v1055 = vpop.f32.mrf.mxu0
        %1056 = vmatprep.mubr.f32.mxu0 %v845
        %1057 = vmatmul.mubr.f32.gmra.mxu0 %v844
        %v1058 = vpop.f32.mrf.mxu0
        %v1059 = vadd.f32 %v925, %v1058
        %v1060 = vpop.f32.mrf.mxu0
        %1061 = vmatprep.mubr.f32.mxu0 %v849
        %1062 = vmatmul.mubr.f32.gmra.mxu0 %v848
        %v1063 = vpop.f32.mrf.mxu0
        %v1064 = vadd.f32 %v925, %v1063
        %v1065 = vpop.f32.mrf.mxu0
        %1066 = vmatprep.mubr.f32.mxu0 %v853
        %1067 = vmatmul.mubr.f32.gmra.mxu0 %v852
        %v1068 = vpop.f32.mrf.mxu0
        %v1069 = vadd.f32 %v925, %v1068
        %v1070 = vpop.f32.mrf.mxu0
        %1071 = vdwg.mxu0
        %1072 = vmatprep.subr.mxu0 0.0
        %1073 = vmatpush1.msra.mxu0 %v903
        %1074 = vmatprep.subr.mxu0 0.0
        %1075 = vmatpush1.msra.mxu0 %v902
        %1076 = vmatprep.subr.mxu0 0.0
        %1077 = vmatpush1.msra.mxu0 %v901
        %1078 = vmatprep.subr.mxu0 0.0
        %1079 = vmatpush1.msra.mxu0 %v900
        %1080 = vmatprep.subr.mxu0 0.0
        %1081 = vmatpush1.msra.mxu0 %v899
        %1082 = vmatprep.subr.mxu0 0.0
        %1083 = vmatpush1.msra.mxu0 %v898
        %1084 = vmatprep.subr.mxu0 0.0
        %1085 = vmatpush1.msra.mxu0 %v897
        %1086 = vmatprep.subr.mxu0 0.0
        %1087 = vmatpush1.msra.mxu0 %v896
        %1088 = vmatprep.subr.mxu0 0.0
        %1089 = vmatpush1.msra.mxu0 %v895
        %1090 = vmatprep.subr.mxu0 0.0
        %1091 = vmatpush1.msra.mxu0 %v894
        %1092 = vmatprep.subr.mxu0 0.0
        %1093 = vmatpush1.msra.mxu0 %v893
        %1094 = vmatprep.subr.mxu0 0.0
        %1095 = vmatpush1.msra.mxu0 %v892
        %1096 = vmatprep.subr.mxu0 0.0
        %1097 = vmatpush1.msra.mxu0 %v891
        %1098 = vmatprep.subr.mxu0 0.0
        %1099 = vmatpush1.msra.mxu0 %v890
        %1100 = vmatprep.subr.mxu0 0.0
        %1101 = vmatpush1.msra.mxu0 %v889
        %1102 = vmatprep.subr.mxu0 0.0
        %1103 = vmatpush1.msra.mxu0 %v888
        %1104 = vmatprep.subr.mxu0 0.0
        %1105 = vmatpush2.msra.mxu0 %v919
        %1106 = vmatprep.subr.mxu0 0.0
        %1107 = vmatpush2.msra.mxu0 %v918
        %1108 = vmatprep.subr.mxu0 0.0
        %1109 = vmatpush2.msra.mxu0 %v917
        %1110 = vmatprep.subr.mxu0 0.0
        %1111 = vmatpush2.msra.mxu0 %v916
        %1112 = vmatprep.subr.mxu0 0.0
        %1113 = vmatpush2.msra.mxu0 %v915
        %1114 = vmatprep.subr.mxu0 0.0
        %1115 = vmatpush2.msra.mxu0 %v914
        %1116 = vmatprep.subr.mxu0 0.0
        %1117 = vmatpush2.msra.mxu0 %v913
        %1118 = vmatprep.subr.mxu0 0.0
        %1119 = vmatpush2.msra.mxu0 %v912
        %1120 = vmatprep.subr.mxu0 0.0
        %1121 = vmatpush2.msra.mxu0 %v911
        %1122 = vmatprep.subr.mxu0 0.0
        %1123 = vmatpush2.msra.mxu0 %v910
        %1124 = vmatprep.subr.mxu0 0.0
        %1125 = vmatpush2.msra.mxu0 %v909
        %1126 = vmatprep.subr.mxu0 0.0
        %1127 = vmatpush2.msra.mxu0 %v908
        %1128 = vmatprep.subr.mxu0 0.0
        %1129 = vmatpush2.msra.mxu0 %v907
        %1130 = vmatprep.subr.mxu0 0.0
        %1131 = vmatpush2.msra.mxu0 %v906
        %1132 = vmatprep.subr.mxu0 0.0
        %1133 = vmatpush2.msra.mxu0 %v905
        %1134 = vmatprep.subr.mxu0 0.0
        %1135 = vmatpush2.msra.mxu0 %v904
        %1136 = vmatprep.mubr.f32.mxu0 %v795
        %1137 = vmatmul.mubr.f32.gmra.mxu0 %v794
        %v1138 = vpop.f32.mrf.mxu0
        %v1139 = vadd.f32 %v994, %v1138
        %v1140 = vpop.f32.mrf.mxu0
        %1141 = vmatprep.mubr.f32.mxu0 %v799
        %1142 = vmatmul.mubr.f32.gmra.mxu0 %v798
        %v1143 = vpop.f32.mrf.mxu0
        %v1144 = vadd.f32 %v999, %v1143
        %v1145 = vpop.f32.mrf.mxu0
        %1146 = vmatprep.mubr.f32.mxu0 %v803
        %1147 = vmatmul.mubr.f32.gmra.mxu0 %v802
        %v1148 = vpop.f32.mrf.mxu0
        %v1149 = vadd.f32 %v1004, %v1148
        %v1150 = vpop.f32.mrf.mxu0
        %1151 = vmatprep.mubr.f32.mxu0 %v807
        %1152 = vmatmul.mubr.f32.gmra.mxu0 %v806
        %v1153 = vpop.f32.mrf.mxu0
        %v1154 = vadd.f32 %v1009, %v1153
        %v1155 = vpop.f32.mrf.mxu0
        %1156 = vmatprep.mubr.f32.mxu0 %v811
        %1157 = vmatmul.mubr.f32.gmra.mxu0 %v810
        %v1158 = vpop.f32.mrf.mxu0
        %v1159 = vadd.f32 %v1014, %v1158
        %v1160 = vpop.f32.mrf.mxu0
        %1161 = vmatprep.mubr.f32.mxu0 %v815
        %1162 = vmatmul.mubr.f32.gmra.mxu0 %v814
        %v1163 = vpop.f32.mrf.mxu0
        %v1164 = vadd.f32 %v1019, %v1163
        %v1165 = vpop.f32.mrf.mxu0
        %1166 = vmatprep.mubr.f32.mxu0 %v819
        %1167 = vmatmul.mubr.f32.gmra.mxu0 %v818
        %v1168 = vpop.f32.mrf.mxu0
        %v1169 = vadd.f32 %v1024, %v1168
        %v1170 = vpop.f32.mrf.mxu0
        %1171 = vmatprep.mubr.f32.mxu0 %v823
        %1172 = vmatmul.mubr.f32.gmra.mxu0 %v822
        %v1173 = vpop.f32.mrf.mxu0
        %v1174 = vadd.f32 %v1029, %v1173
        %v1175 = vpop.f32.mrf.mxu0
        %1176 = vmatprep.mubr.f32.mxu0 %v827
        %1177 = vmatmul.mubr.f32.gmra.mxu0 %v826
        %v1178 = vpop.f32.mrf.mxu0
        %v1179 = vadd.f32 %v1034, %v1178
        %v1180 = vpop.f32.mrf.mxu0
        %1181 = vmatprep.mubr.f32.mxu0 %v831
        %1182 = vmatmul.mubr.f32.gmra.mxu0 %v830
        %v1183 = vpop.f32.mrf.mxu0
        %v1184 = vadd.f32 %v1039, %v1183
        %v1185 = vpop.f32.mrf.mxu0
        %1186 = vmatprep.mubr.f32.mxu0 %v835
        %1187 = vmatmul.mubr.f32.gmra.mxu0 %v834
        %v1188 = vpop.f32.mrf.mxu0
        %v1189 = vadd.f32 %v1044, %v1188
        %v1190 = vpop.f32.mrf.mxu0
        %1191 = vmatprep.mubr.f32.mxu0 %v839
        %1192 = vmatmul.mubr.f32.gmra.mxu0 %v838
        %v1193 = vpop.f32.mrf.mxu0
        %v1194 = vadd.f32 %v1049, %v1193
        %v1195 = vpop.f32.mrf.mxu0
        %1196 = vmatprep.mubr.f32.mxu0 %v843
        %1197 = vmatmul.mubr.f32.gmra.mxu0 %v842
        %v1198 = vpop.f32.mrf.mxu0
        %v1199 = vadd.f32 %v1054, %v1198
        %v1200 = vpop.f32.mrf.mxu0
        %1201 = vmatprep.mubr.f32.mxu0 %v847
        %1202 = vmatmul.mubr.f32.gmra.mxu0 %v846
        %v1203 = vpop.f32.mrf.mxu0
        %v1204 = vadd.f32 %v1059, %v1203
        %v1205 = vpop.f32.mrf.mxu0
        %1206 = vmatprep.mubr.f32.mxu0 %v851
        %1207 = vmatmul.mubr.f32.gmra.mxu0 %v850
        %v1208 = vpop.f32.mrf.mxu0
        %v1209 = vadd.f32 %v1064, %v1208
        %v1210 = vpop.f32.mrf.mxu0
        %1211 = vmatprep.mubr.f32.mxu0 %v855
        %1212 = vmatmul.mubr.f32.gmra.mxu0 %v854
        %v1213 = vpop.f32.mrf.mxu0
        %v1214 = vadd.f32 %v1069, %v1213
        %v1215 = vpop.f32.mrf.mxu0
        %1216 = vdwg.mxu0
        %1217 = vst [vmem:[%s285] sm:$0xff] %v1139
        %1218 = vst [vmem:[%s285 + $0x8] sm:$0xff] %v1144
        %1219 = vst [vmem:[%s285 + $0x10] sm:$0xff] %v1149
        %1220 = vst [vmem:[%s285 + $0x18] sm:$0xff] %v1154
        %1221 = vst [vmem:[%s285 + $0x20] sm:$0xff] %v1159
        %1222 = vst [vmem:[%s285 + $0x28] sm:$0xff] %v1164
        %1223 = vst [vmem:[%s285 + $0x30] sm:$0xff] %v1169
        %1224 = vst [vmem:[%s285 + $0x38] sm:$0xff] %v1174
        %1225 = vst [vmem:[%s285 + $0x40] sm:$0xff] %v1179
        %1226 = vst [vmem:[%s285 + $0x48] sm:$0xff] %v1184
        %1227 = vst [vmem:[%s285 + $0x50] sm:$0xff] %v1189
        %1228 = vst [vmem:[%s285 + $0x58] sm:$0xff] %v1194
        %1229 = vst [vmem:[%s285 + $0x60] sm:$0xff] %v1199
        %1230 = vst [vmem:[%s285 + $0x68] sm:$0xff] %v1204
        %1231 = vst [vmem:[%s285 + $0x70] sm:$0xff] %v1209
        %1232 = vst [vmem:[%s285 + $0x78] sm:$0xff] %v1214
        %s1233 = sand.u32 %s142, 1
        %s1234 = scalar_lea.sflag [#allocation4], %s1233
        %s1235 = sand.u32 %s142, 1
        %s1236 = smul.addr %s1235, 128
        %s1237 = scalar_lea.vmem [#allocation10], %s1236
        // Predicated region
        $region57: #{tpu_custom_call.1} parent=39 // pred_check
          %p1238 = pneg %p152
        $region58: #{tpu_custom_call.1} parent=39 // pred_check_branch
          %1240 = sbr.rel (%p1238) target = $region60
        $region59: #{tpu_custom_call.1} parent=39 // pred_region
          %s1241 = smul.u32 16, %s24
          %s1243 = ssub.s32 2048, 2048
          %1244 = vsyncadd %s1234, %s1243
          %s1245 = smul.addr %s1241, 128
          %s1246 = scalar_lea.hbm %s5, %s1245
          %s1247 = sshll.u32 %s1237, 4
          %s1248 = int_to_ptr.vmem [resolvable:$true] %s1247
          %1253 = dma.vmem_to_hbm [thread:$0]  %s1248, 2048, %s1246, %s1234, 128, 128, 8
        $region60: #{tpu_custom_call.1} parent=39 // pred_fallthru
          _
      $region40: #{tpu_custom_call.1} parent=5 // pred_fallthru
        _
      %p1254 = scmp.le.s32.totalorder 2, %s19
      // Predicated region
      $region61: #{tpu_custom_call.1} parent=5 // pred_check
        %p1255 = pneg %p1254
      $region62: #{tpu_custom_call.1} parent=5 // pred_check_branch
        %1257 = sbr.rel (%p1255) target = $region64
      $region63: #{tpu_custom_call.1} parent=5 // pred_region
        %s1258 = ssub.s32 %s19, 2
        // Predicated region
        $region65: #{tpu_custom_call.1} parent=63 // pred_check
          %p1259 = pneg %p158
        $region66: #{tpu_custom_call.1} parent=63 // pred_check_branch
          %1261 = sbr.rel (%p1259) target = $region68
        $region67: #{tpu_custom_call.1} parent=63 // pred_region
          %s1262 = sand.u32 %s143, 1
          %s1263 = scalar_lea.sflag [#allocation4], %s1262
          %s1264 = sand.u32 %s143, 1
          %s1265 = smul.addr %s1264, 128
          %s1266 = scalar_lea.vmem [#allocation10], %s1265
          %1267 = dma.done %s1263, 2048
        $region68: #{tpu_custom_call.1} parent=63 // pred_fallthru
          _
      $region64: #{tpu_custom_call.1} parent=5 // pred_fallthru
        _
    $region6: #{tpu_custom_call.1} parent=1 // loop_footer
      %s23 = sadd.s32 1, %s19
    $region7: #{tpu_custom_call.1} parent=1 // loop_footer_branch
      %18 = sbr.rel target = $region3
    $region8: #{tpu_custom_call.1} parent=1 // loop_exit
      _
    %1268 = vsyncpa [#allocation3], 1
    %s1269 = scalar_lea.sflag [#allocation3], 1
    %1270 = vsyncpa %s1269, 1
    %1271 = vsyncpa [#allocation6], 1
    %1272 = vsyncpa [#allocation9], 1
    %1273 = vsyncpa [#allocation4], 1
    %s1274 = scalar_lea.sflag [#allocation4], 1
    %1275 = vsyncpa %s1274, 1

</llo_original>
